<compile_context>
chip_gen: v6e
topology: v6e:2x2x1
jax: 0.10.0
libtpu: 0.0.40
codegen_flags: <defaults>
</compile_context>

<pallas_src>
import jax
import jax.numpy as jnp
from jax.experimental import pallas as pl
from jax.experimental.pallas import tpu as pltpu

_LANES = 128
_SUBLANES = 8
# Per-tile byte budget (in the input dtype). With a double-buffered input
# stream plus one carry scratch, peak VMEM ~ 3x this, safe on all generations.
_MAX_TILE_BYTES = 4 * 1024 * 1024


def _make_tv_kernel(tile_s, inv_count):
    def _tv_kernel(x_ref, o_ref, prev_ref, acc_ref):
        # x_ref:   (1, 1, tile_s, 128) block of params[b, t, n_tile]
        # o_ref:   SMEM (1, 1) f32 scalar result
        # prev_ref: VMEM (tile_s, 128) carry of the previous phase
        # acc_ref: VMEM (8, 128) f32 running partial sums
        b = pl.program_id(0)
        n = pl.program_id(1)
        t = pl.program_id(2)
        nb = pl.num_programs(0)
        nn = pl.num_programs(1)
        nt = pl.num_programs(2)

        @pl.when((b == 0) & (n == 0) & (t == 0))
        def _():
            acc_ref[...] = jnp.zeros_like(acc_ref)

        cur = x_ref[0, 0]  # (tile_s, 128), input dtype

        @pl.when(t > 0)
        def _():
            diff = cur.astype(jnp.float32) - prev_ref[...].astype(jnp.float32)
            ad = jnp.abs(diff)
            # Fold (tile_s, 128) -> (8, 128): vreg-wise VPU adds only, no XLU.
            acc_ref[...] += jnp.sum(
                ad.reshape(tile_s // _SUBLANES, _SUBLANES, _LANES), axis=0
            )

        # Carry current phase for the next t of this (b, n_tile).
        prev_ref[...] = cur

        @pl.when((b == nb - 1) & (n == nn - 1) & (t == nt - 1))
        def _():
            # Single cross-lane reduce + scale + scalar write, once per call.
            o_ref[0, 0] = jnp.sum(acc_ref[...]) * jnp.float32(inv_count)

    return _tv_kernel


def respiratory_tv_regularization(params):
    """Pallas equivalent of RespiratoryTVRegularization.forward."""
    if params.ndim == 4:
        # PyTorch returns the Python int 0 here.
        return 0
    assert params.ndim == 5, "expected 4-D or 5-D input"

    B, T, C, H, W = params.shape
    N = C * H * W
    if T < 2:
        # torch: mean of an empty tensor -> NaN
        return jnp.float32(jnp.nan)

    itemsize = jnp.dtype(params.dtype).itemsize
    max_tile_s = max(
        _SUBLANES,
        (_MAX_TILE_BYTES // (_LANES * itemsize)) // _SUBLANES * _SUBLANES,
    )
    s_raw = -(-N // _LANES)                              # rows of 128 lanes
    s_rounded = -(-s_raw // _SUBLANES) * _SUBLANES       # multiple of 8
    tile_s = min(max_tile_s, s_rounded)
    s_pad = -(-s_raw // tile_s) * tile_s                 # multiple of tile_s
    n_pad = s_pad * _LANES

    x = params.reshape(B, T, N)
    if n_pad != N:
        # Zero padding contributes |0 - 0| = 0 to the sum; mean divides by N.
        x = jnp.pad(x, ((0, 0), (0, 0), (0, n_pad - N)))
    x = x.reshape(B, T, s_pad, _LANES)

    num_n_tiles = s_pad // tile_s
    inv_count = 1.0 / float(B * (T - 1) * N)

    kernel = _make_tv_kernel(tile_s, inv_count)

    out = pl.pallas_call(
        kernel,
        out_shape=jax.ShapeDtypeStruct((1, 1), jnp.float32),
        grid_spec=pltpu.PrefetchScalarGridSpec(
            num_scalar_prefetch=0,
            grid=(B, num_n_tiles, T),
            in_specs=[
                # Single stream over params[b, t, n_tile]; T is the innermost
                # grid axis so the VMEM carry of phase t-1 is always valid.
                pl.BlockSpec((1, 1, tile_s, _LANES), lambda b, n, t: (b, t, n, 0)),
            ],
            out_specs=pl.BlockSpec(
                (1, 1), lambda b, n, t: (0, 0), memory_space=pltpu.SMEM
            ),
            scratch_shapes=[
                pltpu.VMEM((tile_s, _LANES), params.dtype),     # previous phase
                pltpu.VMEM((_SUBLANES, _LANES), jnp.float32),   # partial sums
            ],
        ),
        compiler_params=pltpu.CompilerParams(
            # The scalar output and carry scratch accumulate across all axes.
            # TODO(synk): per-core partial sums would let v7x's 2 TCs split B.
            dimension_semantics=("arbitrary", "arbitrary", "arbitrary"),
            vmem_limit_bytes=32 * 1024 * 1024,
        ),
    )(x)

    return out[0, 0]


if __name__ == "__main__":
    key = jax.random.PRNGKey(0)

    # Small 5-D respiratory-phase volume: (B, T, C, H, W)
    B, T, C, H, W = 2, 5, 4, 16, 16
    params5 = jax.random.normal(key, (B, T, C, H, W), dtype=jnp.float32)

    result = respiratory_tv_regularization(params5)
    result = jax.block_until_ready(result)

    ref = jnp.mean(jnp.abs(params5[:, 1:] - params5[:, :-1]))
    assert jnp.allclose(result, ref, rtol=1e-5, atol=1e-6), (result, ref)

    # Odd spatial size (exercises the zero-pad path: C*H*W not a multiple of 128).
    params5_odd = jax.random.normal(key, (2, 3, 3, 10, 12), dtype=jnp.float32)
    result_odd = jax.block_until_ready(respiratory_tv_regularization(params5_odd))
    ref_odd = jnp.mean(jnp.abs(params5_odd[:, 1:] - params5_odd[:, :-1]))
    assert jnp.allclose(result_odd, ref_odd, rtol=1e-5, atol=1e-6), (result_odd, ref_odd)

    # 4-D branch returns 0 (no kernel launch, mirroring the PyTorch module).
    params4 = jax.random.normal(key, (B, C, H, W), dtype=jnp.float32)
    assert respiratory_tv_regularization(params4) == 0

    print("KERNEL_OK")
</pallas_src>

<mosaic_0001>
module attributes {stable_mosaic.version = 11 : i64} {
  func.func @_tv_kernel(%arg0: i32, %arg1: i32, %arg2: i32, %arg3: memref<1x1x8x128xf32, #tpu.memory_space<vmem>>, %arg4: memref<1x1xf32, #tpu.memory_space<smem>>, %arg5: memref<8x128xf32, #tpu.memory_space<vmem>>, %arg6: memref<8x128xf32, #tpu.memory_space<vmem>>) attributes {dimension_semantics = [#tpu.dimension_semantics<arbitrary>, #tpu.dimension_semantics<arbitrary>, #tpu.dimension_semantics<arbitrary>], iteration_bounds = array<i64: 2, 1, 5>, scalar_prefetch = 0 : i64, scratch_operands = 2 : i64, tpu.core_type = #tpu.core_type<tc>, window_params = [{transform_indices = @transform_0, window_bounds = array<i64: 1, 1, 8, 128>}, {transform_indices = @transform_1, window_bounds = array<i64: 1, 1>}]} {
    %c0_i32 = arith.constant 0 : i32
    %0 = arith.cmpi eq, %arg0, %c0_i32 : i32
    %c0_i32_0 = arith.constant 0 : i32
    %1 = arith.cmpi eq, %arg1, %c0_i32_0 : i32
    %2 = arith.andi %0, %1 : i1
    %c0_i32_1 = arith.constant 0 : i32
    %3 = arith.cmpi eq, %arg2, %c0_i32_1 : i32
    %4 = arith.andi %2, %3 : i1
    %5 = arith.extui %4 : i1 to i32
    %c0_i32_2 = arith.constant 0 : i32
    %6 = arith.cmpi ne, %5, %c0_i32_2 : i32
    scf.if %6 {
      %cst = arith.constant 0.000000e+00 : f32
      %20 = vector.broadcast %cst : f32 to vector<8x128xf32>
      %c0_12 = arith.constant 0 : index
      %c0_13 = arith.constant 0 : index
      %21 = vector.load %arg6[%c0_12, %c0_13] : memref<8x128xf32, #tpu.memory_space<vmem>>, vector<8x128xf32>
      tpu.vector_store %arg6[%c0_12, %c0_13], %20 {strides = array<i32>} : memref<8x128xf32, #tpu.memory_space<vmem>>, vector<8x128xf32>,
    } else {
    }
    %c0 = arith.constant 0 : index
    %c0_3 = arith.constant 0 : index
    %c0_4 = arith.constant 0 : index
    %c0_5 = arith.constant 0 : index
    %7 = vector.load %arg3[%c0, %c0_3, %c0_4, %c0_5] : memref<1x1x8x128xf32, #tpu.memory_space<vmem>>, vector<1x1x8x128xf32>
    %8 = vector.shape_cast %7 : vector<1x1x8x128xf32> to vector<8x128xf32>
    %c0_i32_6 = arith.constant 0 : i32
    %9 = arith.cmpi sgt, %arg2, %c0_i32_6 : i32
    %10 = arith.extui %9 : i1 to i32
    %c0_i32_7 = arith.constant 0 : i32
    %11 = arith.cmpi ne, %10, %c0_i32_7 : i32
    scf.if %11 {
      %c0_12 = arith.constant 0 : index
      %c0_13 = arith.constant 0 : index
      %20 = vector.load %arg5[%c0_12, %c0_13] : memref<8x128xf32, #tpu.memory_space<vmem>>, vector<8x128xf32>
      %21 = arith.subf %8, %20 : vector<8x128xf32>
      %22 = math.absf %21 : vector<8x128xf32>
      %c0_14 = arith.constant 0 : index
      %c0_15 = arith.constant 0 : index
      %23 = vector.load %arg6[%c0_14, %c0_15] : memref<8x128xf32, #tpu.memory_space<vmem>>, vector<8x128xf32>
      %24 = vector.shape_cast %22 : vector<8x128xf32> to vector<1x8x128xf32>
      %cst = arith.constant dense<0.000000e+00> : vector<8x128xf32>
      %25 = vector.multi_reduction <add>, %24, %cst [0] : vector<1x8x128xf32> to vector<8x128xf32>
      %26 = arith.addf %23, %25 : vector<8x128xf32>
      %c0_16 = arith.constant 0 : index
      %c0_17 = arith.constant 0 : index
      %27 = vector.load %arg6[%c0_16, %c0_17] : memref<8x128xf32, #tpu.memory_space<vmem>>, vector<8x128xf32>
      tpu.vector_store %arg6[%c0_16, %c0_17], %26 {strides = array<i32>} : memref<8x128xf32, #tpu.memory_space<vmem>>, vector<8x128xf32>,
    } else {
    }
    %c0_8 = arith.constant 0 : index
    %c0_9 = arith.constant 0 : index
    %12 = vector.load %arg5[%c0_8, %c0_9] : memref<8x128xf32, #tpu.memory_space<vmem>>, vector<8x128xf32>
    tpu.vector_store %arg5[%c0_8, %c0_9], %8 {strides = array<i32>} : memref<8x128xf32, #tpu.memory_space<vmem>>, vector<8x128xf32>,
    %c1_i32 = arith.constant 1 : i32
    %13 = arith.cmpi eq, %arg0, %c1_i32 : i32
    %c0_i32_10 = arith.constant 0 : i32
    %14 = arith.cmpi eq, %arg1, %c0_i32_10 : i32
    %15 = arith.andi %13, %14 : i1
    %c4_i32 = arith.constant 4 : i32
    %16 = arith.cmpi eq, %arg2, %c4_i32 : i32
    %17 = arith.andi %15, %16 : i1
    %18 = arith.extui %17 : i1 to i32
    %c0_i32_11 = arith.constant 0 : i32
    %19 = arith.cmpi ne, %18, %c0_i32_11 : i32
    scf.if %19 {
      %c0_12 = arith.constant 0 : index
      %c0_13 = arith.constant 0 : index
      %20 = vector.load %arg6[%c0_12, %c0_13] : memref<8x128xf32, #tpu.memory_space<vmem>>, vector<8x128xf32>
      %21 = vector.shape_cast %20 : vector<8x128xf32> to vector<1x8x128xf32>
      %cst = arith.constant dense<0.000000e+00> : vector<1xf32>
      %22 = vector.multi_reduction <add>, %21, %cst [1, 2] : vector<1x8x128xf32> to vector<1xf32>
      %23 = vector.shape_cast %22 : vector<1xf32> to vector<1x1x1xf32>
      %24 = vector.extract %23[0, 0, 0] : f32 from vector<1x1x1xf32>
      %cst_14 = arith.constant 1.22070313E-4 : f32
      %25 = arith.mulf %24, %cst_14 : f32
      %c0_15 = arith.constant 0 : index
      %c0_16 = arith.constant 0 : index
      %26 = memref.load %arg4[%c0_15, %c0_16] : memref<1x1xf32, #tpu.memory_space<smem>>
      memref.store %25, %arg4[%c0_15, %c0_16] : memref<1x1xf32, #tpu.memory_space<smem>>
    } else {
    }
    return
  }
  func.func @transform_0(%arg0: i32, %arg1: i32, %arg2: i32) -> (i32, i32, i32, i32) {
    %c0_i32 = arith.constant 0 : i32
    %c0_i32_0 = arith.constant 0 : i32
    return %arg0, %arg2, %arg1, %c0_i32 : i32, i32, i32, i32
  }
  func.func @transform_1(%arg0: i32, %arg1: i32, %arg2: i32) -> (i32, i32) {
    %c0_i32 = arith.constant 0 : i32
    %c0_i32_0 = arith.constant 0 : i32
    %c0_i32_1 = arith.constant 0 : i32
    return %c0_i32, %c0_i32_0 : i32, i32
  }
}

</mosaic_0001>

<llo_original>
// kernel: tpu_custom_call.1
$region0: #{tpu_custom_call.1}
  #allocation0 [shape = 'u32[]', space=smem, size = 0x4, offset = 0x4, fixed_abs, tag = 'smem constant byte address 0x4 - core index']
  #allocation1 [shape = 'u32[144,128]{1,0:T(1,128)}', space=vmem, size = 0x12000, scoped, tag = 'internal scratch']
  #allocation2 [shape = 'f32[8,128]{1,0:T(8,128)}', space=vmem, size = 0x1000, scoped, tag = 'scratch operand']
  #allocation3 [shape = 'f32[8,128]{1,0:T(8,128)}', space=vmem, size = 0x1000, scoped, tag = 'scratch operand']
  %s0 = inlined_call_operand.hbm [shape: f32[2,5,8,128], index: 0, kind: input, shape index: {}]
  %s1 = inlined_call_operand.hbm [shape: f32[1,1], index: 1, kind: output, shape index: {}]
  %s2 = sld [smem:[#allocation0]]
  $region53: #{tpu_custom_call.1} parent=0
    _
  %s4 = ssub.s32 1, %s2
  %s5 = scalar_select 0, %s4, %s2
  $region1: #{tpu_custom_call.1} parent=0
    #allocation4 [shape = 'u8[8192]{0}', space=vmem, size = 0x2000, scoped, tag = 'input window, operand 0']
    #allocation5 [shape = 's32[2]{0}', space=sflag, size = 0x8, scoped, tag = 'scoped memory for tpu_custom_call.1']
    #allocation6 [shape = 's32[2]{0}', space=sflag, size = 0x8, scoped, tag = 'scoped memory for tpu_custom_call.1']
    #allocation7 [shape = 'u8[512]{0}', space=smem, size = 0x200, scoped, tag = 'output window, operand 0, single buffered']
    %6 = vsyncpa [#allocation5], 0
    %s7 = scalar_lea.sflag [#allocation5], 1
    %8 = vsyncpa %s7, 0
    %9 = vsyncpa [#allocation6], 0
    loop: start=0, step=1, limit=12
    $region2: #{tpu_custom_call.1} parent=1 // loop_pre_header
      _
    $region3: #{tpu_custom_call.1} parent=1 // loop_header
      %s11 = sphi 0, %s15
      %p12 = scmp.ge.s32.totalorder %s11, 12
      %s18 = sphi 0, %s37
      %s19 = sphi 0, %s33
      %s20 = sphi 0, %s29
      %s21 = sphi 0, %s18
      %s22 = sphi 0, %s19
      %s23 = sphi 0, %s20
      %s24 = sphi 0, %s21
      %s25 = sphi 0, %s22
      %s26 = sphi 0, %s23
      %s44 = sphi 0, %s46
      %s47 = sphi 0, %s44
      %s48 = sphi 0, %s47
      %s64 = sphi 0, %s48
      %s68 = sphi 0, %s68
      %s70 = sphi 0, %s68
      %s71 = sphi 0, %s70
      %s85 = sphi 0, %s71
    $region4: #{tpu_custom_call.1} parent=1 // loop_header_branch
      %14 = sbr.rel (%p12) target = $region8
    $region5: #{tpu_custom_call.1} parent=1 // loop_body
      %s16 = ssub.s32 %s11, 1
      %s17 = ssub.s32 %s11, 2
      %s27 = sadd.s32 1, %s20
      %p28 = scmp.ge.s32.totalorder %s27, 5
      %s29 = scalar_select %p28, 0, %s27
      %s30 = sadd.s32 1, %s19
      %s31 = scalar_select %p28, %s30, %s19
      %p32 = scmp.ge.s32.totalorder %s31, 1
      %s33 = scalar_select %p32, 0, %s31
      %s34 = sadd.s32 1, %s18
      %s35 = scalar_select %p32, %s34, %s18
      %p36 = scmp.ge.s32.totalorder %s35, 2
      %s37 = scalar_select %p36, 0, %s35
      %s38 = ssub.s32 %s18, %s37
      %s39 = ssub.s32 %s20, %s29
      %s40 = sor.u32 %s38, %s39
      %s41 = ssub.s32 %s19, %s33
      %s42 = sor.u32 %s40, %s41
      %p43 = scmp.eq.s32.totalorder %s42, 0
      %s45 = sadd.s32 %s44, 1
      %s46 = scalar_select %p43, %s44, %s45
      %p49 = pneg %p43
      %p50 = scmp.eq.s32.totalorder %s11, 9
      %p51 = por %p49, %p50
      %p52 = scmp.ne.s32.totalorder %s44, %s47
      %p53 = scmp.eq.s32.totalorder %s11, 0
      %p54 = por %p52, %p53
      %p55 = scmp.ne.s32.totalorder %s44, %s47
      %p56 = scmp.eq.s32.totalorder %s16, 9
      %p57 = por %p55, %p56
      %p58 = scmp.ne.s32.totalorder %s47, %s48
      %p59 = scmp.eq.s32.totalorder %s16, 0
      %p60 = por %p58, %p59
      %p61 = scmp.ne.s32.totalorder %s47, %s48
      %p62 = scmp.eq.s32.totalorder %s17, 9
      %p63 = por %p61, %p62
      %p65 = scmp.ne.s32.totalorder %s48, %s64
      %p66 = scmp.eq.s32.totalorder %s17, 0
      %p67 = por %p65, %p66
      %s69 = sadd.s32 %s68, 1
      %p72 = scmp.eq.s32.totalorder %s11, 9
      %p73 = scmp.ne.s32.totalorder %s68, %s70
      %p74 = scmp.eq.s32.totalorder %s11, 0
      %p75 = por %p73, %p74
      %p76 = scmp.ne.s32.totalorder %s68, %s70
      %p77 = scmp.eq.s32.totalorder %s16, 9
      %p78 = por %p76, %p77
      %p79 = scmp.ne.s32.totalorder %s70, %s71
      %p80 = scmp.eq.s32.totalorder %s16, 0
      %p81 = por %p79, %p80
      %p82 = scmp.ne.s32.totalorder %s70, %s71
      %p83 = scmp.eq.s32.totalorder %s17, 9
      %p84 = por %p82, %p83
      %p86 = scmp.ne.s32.totalorder %s71, %s85
      %p87 = scmp.eq.s32.totalorder %s17, 0
      %p88 = por %p86, %p87
      %p89 = scmp.le.s32.totalorder 1, %s11
      %p90 = scmp.lt.s32.totalorder %s11, 11
      %p91 = pnand %p89, %p90
      %p92 = pneg %p91
      // Predicated region
      $region9: #{tpu_custom_call.1} parent=5 // pred_check
        _
      $region10: #{tpu_custom_call.1} parent=5 // pred_check_branch
        %94 = sbr.rel (%p91) target = $region12
      $region11: #{tpu_custom_call.1} parent=5 // pred_region
        %s95 = ssub.s32 %s11, 1
      $region12: #{tpu_custom_call.1} parent=5 // pred_fallthru
        _
      %p96 = scmp.lt.s32.totalorder %s11, 10
      // Predicated region
      $region13: #{tpu_custom_call.1} parent=5 // pred_check
        %p97 = pneg %p96
      $region14: #{tpu_custom_call.1} parent=5 // pred_check_branch
        %99 = sbr.rel (%p97) target = $region16
      $region15: #{tpu_custom_call.1} parent=5 // pred_region
        // Predicated region
        $region17: #{tpu_custom_call.1} parent=15 // pred_check
          %p100 = pneg %p54
        $region18: #{tpu_custom_call.1} parent=15 // pred_check_branch
          %102 = sbr.rel (%p100) target = $region20
        $region19: #{tpu_custom_call.1} parent=15 // pred_region
          %s103 = sand.u32 %s44, 1
          %s104 = scalar_lea.sflag [#allocation5], %s103
          %s105 = sand.u32 %s44, 1
          %s106 = smul.addr %s105, 8
          %s107 = scalar_lea.vmem [#allocation4], %s106
          %s109 = ssub.s32 128, 128
          %110 = vsyncadd %s104, %s109
          %s111 = sadd.s32 %s19, %s20
          %s112 = smul.addr %s18, 5
          %s113 = sadd.s32 %s111, %s112
          %s114 = smul.addr %s113, 128
          %s115 = scalar_lea.hbm %s0, %s114
          %s117 = sshll.u32 %s107, 4
          %s118 = int_to_ptr.vmem [resolvable:$true] %s117
          %120 = dma.hbm_to_vmem [thread:$0]  %s115, 128, %s118, %s104
        $region20: #{tpu_custom_call.1} parent=15 // pred_fallthru
          _
      $region16: #{tpu_custom_call.1} parent=5 // pred_fallthru
        _
      %p121 = scmp.le.s32.totalorder 1, %s11
      %p122 = scmp.lt.s32.totalorder %s11, 11
      %p123 = pnand %p121, %p122
      %p124 = pneg %p123
      // Predicated region
      $region21: #{tpu_custom_call.1} parent=5 // pred_check
        _
      $region22: #{tpu_custom_call.1} parent=5 // pred_check_branch
        %126 = sbr.rel (%p123) target = $region24
      $region23: #{tpu_custom_call.1} parent=5 // pred_region
        %s127 = ssub.s32 %s11, 1
        %s128 = sand.u32 %s47, 1
        %s129 = scalar_lea.sflag [#allocation5], %s128
        %s130 = sand.u32 %s47, 1
        %s131 = smul.addr %s130, 8
        %s132 = scalar_lea.vmem [#allocation4], %s131
        // Predicated region
        $region25: #{tpu_custom_call.1} parent=23 // pred_check
          %p133 = pneg %p60
        $region26: #{tpu_custom_call.1} parent=23 // pred_check_branch
          %135 = sbr.rel (%p133) target = $region28
        $region27: #{tpu_custom_call.1} parent=23 // pred_region
          %136 = dma.done %s129, 128
        $region28: #{tpu_custom_call.1} parent=23 // pred_fallthru
          _
        %s137 = sand.u32 %s47, 1
        %s138 = scalar_lea.sflag [#allocation5], %s137
        %s139 = sand.u32 %s47, 1
        %s140 = smul.addr %s139, 8
        %s141 = scalar_lea.vmem [#allocation4], %s140
        %p142 = pneg %p60
        %p143 = pneg %p57
        %p144 = pneg %p81
        %p145 = pneg %p78
        %p146 = scmp.eq.s32.totalorder %s21, 0
        %p147 = scmp.eq.s32.totalorder %s22, 0
        %p148 = pnand %p146, %p147
        %p149 = pneg %p148
        %p150 = scmp.eq.s32.totalorder %s23, 0
        %p151 = pnand %p149, %p150
        %p152 = pneg %p151
        // Predicated region
        $region29: #{tpu_custom_call.1} parent=23 // pred_check
          _
        $region30: #{tpu_custom_call.1} parent=23 // pred_check_branch
          %154 = sbr.rel (%p151) target = $region32
        $region31: #{tpu_custom_call.1} parent=23 // pred_region
          %155 = vst [vmem:[#allocation3] sm:$0xff] 0.0
        $region32: #{tpu_custom_call.1} parent=23 // pred_fallthru
          _
        %v156 = vld [vmem:[%s132] sm:$0xff]
        %p157 = scmp.gt.s32.totalorder %s23, 0
        // Predicated region
        $region33: #{tpu_custom_call.1} parent=23 // pred_check
          %p158 = pneg %p157
        $region34: #{tpu_custom_call.1} parent=23 // pred_check_branch
          %160 = sbr.rel (%p158) target = $region36
        $region35: #{tpu_custom_call.1} parent=23 // pred_region
          %v161 = vld [vmem:[#allocation2] sm:$0xff]
          %v162 = vsub.f32 %v156, %v161
          %v163 = vand.u32 2147483647, %v162
          %v164 = vld [vmem:[#allocation3] sm:$0xff]
          %v165 = vadd.f32 %v163, 0.0
          %v166 = vadd.f32 %v164, %v165
          %167 = vst [vmem:[#allocation3] sm:$0xff] %v166
        $region36: #{tpu_custom_call.1} parent=23 // pred_fallthru
          _
        %168 = vst [vmem:[#allocation2] sm:$0xff] %v156
        %p169 = scmp.eq.s32.totalorder %s21, 1
        %p170 = pnand %p169, %p147
        %p171 = pneg %p170
        %p172 = scmp.eq.s32.totalorder %s23, 4
        %p173 = pnand %p171, %p172
        %p174 = pneg %p173
        // Predicated region
        $region37: #{tpu_custom_call.1} parent=23 // pred_check
          _
        $region38: #{tpu_custom_call.1} parent=23 // pred_check_branch
          %176 = sbr.rel (%p173) target = $region40
        $region39: #{tpu_custom_call.1} parent=23 // pred_region
          %v177 = vld [vmem:[#allocation3] sm:$0xff]
          %178 = vadd.xlane.f32.xlu0 %v177
          %v179 = vpop.xlane.xlu0 %178
          %v180 = vrot.slane %v179, 4
          %v181 = vadd.f32 %v179, %v180
          %v182 = vrot.slane %v181, 2
          %v183 = vadd.f32 %v181, %v182
          %v184 = vrot.slane %v183, 1
          %v185 = vadd.f32 %v183, %v184
          %s186 = vtos %v185
          %s187 = smul.f32 %s186, 0.00012207031
          %s188 = scalar_lea.smem [#allocation7], 0
          %189 = sst [smem:[%s188]] %s187
        $region40: #{tpu_custom_call.1} parent=23 // pred_fallthru
          _
        // Predicated region
        $region41: #{tpu_custom_call.1} parent=23 // pred_check
          %p190 = pneg %p78
        $region42: #{tpu_custom_call.1} parent=23 // pred_check_branch
          %192 = sbr.rel (%p190) target = $region44
        $region43: #{tpu_custom_call.1} parent=23 // pred_region
          %s194 = ssub.s32 16, 16
          %195 = vsyncadd [#allocation6], %s194
          %198 = dma.smem_to_hbm [#allocation7], 16, %s1, [#allocation6]
        $region44: #{tpu_custom_call.1} parent=23 // pred_fallthru
          _
        // Predicated region
        $region45: #{tpu_custom_call.1} parent=23 // pred_check
          %p199 = pneg %p78
        $region46: #{tpu_custom_call.1} parent=23 // pred_check_branch
          %201 = sbr.rel (%p199) target = $region48
        $region47: #{tpu_custom_call.1} parent=23 // pred_region
          %202 = dma.done [#allocation6], 16
        $region48: #{tpu_custom_call.1} parent=23 // pred_fallthru
          _
        %203 = sfence
      $region24: #{tpu_custom_call.1} parent=5 // pred_fallthru
        _
      %p204 = scmp.le.s32.totalorder 2, %s11
      // Predicated region
      $region49: #{tpu_custom_call.1} parent=5 // pred_check
        %p205 = pneg %p204
      $region50: #{tpu_custom_call.1} parent=5 // pred_check_branch
        %207 = sbr.rel (%p205) target = $region52
      $region51: #{tpu_custom_call.1} parent=5 // pred_region
        %s208 = ssub.s32 %s11, 2
      $region52: #{tpu_custom_call.1} parent=5 // pred_fallthru
        _
    $region6: #{tpu_custom_call.1} parent=1 // loop_footer
      %s15 = sadd.s32 1, %s11
    $region7: #{tpu_custom_call.1} parent=1 // loop_footer_branch
      %10 = sbr.rel target = $region3
    $region8: #{tpu_custom_call.1} parent=1 // loop_exit
      _
    %209 = vsyncpa [#allocation5], 1
    %s210 = scalar_lea.sflag [#allocation5], 1
    %211 = vsyncpa %s210, 1
    %212 = vsyncpa [#allocation6], 1
    %s213 = scalar_lea.sflag [#allocation6], 1
    %214 = vsyncpa %s213, 1

</llo_original>
